<compile_context>
chip_gen: v6e
topology: v6e:2x2x1
jax: 0.10.0
libtpu: 0.0.40
codegen_flags: <defaults>
</compile_context>

<pallas_src>
import numpy as np
import jax
import jax.numpy as jnp
from jax.experimental import pallas as pl
from jax.experimental.pallas import tpu as pltpu


# ----------------------------------------------------------------------------
# Small helpers
# ----------------------------------------------------------------------------
def _row_tile(m, cap=512):
    """Largest row tile <= cap that divides m and is a multiple of 8 (else full m)."""
    if m <= cap:
        return m
    for t in range(min(cap, m), 7, -1):
        if m % t == 0 and t % 8 == 0:
            return t
    return m  # no clean divisor: single full block (only hit for awkward small m)


def _pad_bytes(a):
    """Approximate VMEM footprint of one operand after (8,128) tile padding."""
    s = a.shape
    if len(s) == 0:
        return 512
    lanes = -(-s[-1] // 128) * 128
    subl = (-(-s[-2] // 8) * 8) if len(s) >= 2 else 1
    outer = int(np.prod(s[:-2])) if len(s) > 2 else 1
    return outer * subl * lanes * a.dtype.itemsize


def _vmem_limit(arrays, headroom=8 << 20, cap=48 << 20):
    """Explicit scoped-VMEM budget sized from the padded operand footprint (x2 buffers)."""
    return int(min(cap, 2 * sum(_pad_bytes(a) for a in arrays) + headroom))


def build_slot_gather(src, dst, n_nodes):
    """Pack edge_index into per-destination in-neighbour slots.

    Returns (G, V, dmax): G is (dmax*n, n) bf16 with G[s*n + d, src] = 1 for the s-th
    in-edge of destination d (0/1 values are exact in bf16); V is (dmax, n, 1) slot
    validity in {0,1}.
    """
    src = np.asarray(src)
    dst = np.asarray(dst)
    deg = np.zeros(n_nodes, np.int64)
    entries = []
    for s, d in zip(src.tolist(), dst.tolist()):
        entries.append((int(d), int(deg[d]), int(s)))
        deg[d] += 1
    dmax = max(1, int(deg.max()) if len(entries) else 1)
    G = np.zeros((dmax, n_nodes, n_nodes), np.float32)
    V = np.zeros((dmax, n_nodes, 1), np.float32)
    for d, k, s in entries:
        G[k, d, s] = 1.0
        V[k, d, 0] = 1.0
    return (jnp.asarray(G.reshape(dmax * n_nodes, n_nodes), jnp.bfloat16),
            jnp.asarray(V, jnp.float32), dmax)


# ----------------------------------------------------------------------------
# Kernel 1: fc layer  y = relu(x @ W + b)   (bf16 matmul inputs, f32 accumulation)
# ----------------------------------------------------------------------------
def fc_forward(x_bf16, w_bf16, b_f32):
    M, K = x_bf16.shape
    N = w_bf16.shape[1]
    tm = _row_tile(M, cap=512)          # review: raise row tile (HBM-read bound on x)
    b2 = b_f32.reshape(1, N).astype(jnp.float32)

    def kernel(x_ref, w_ref, b_ref, o_ref):
        acc = jnp.dot(x_ref[...], w_ref[...], preferred_element_type=jnp.float32)
        o_ref[...] = jnp.maximum(acc + b_ref[...], 0.0)

    return pl.pallas_call(
        kernel,
        out_shape=jax.ShapeDtypeStruct((M, N), jnp.float32),
        grid=(M // tm,),
        in_specs=[
            pl.BlockSpec((tm, K), lambda i: (i, 0)),
            pl.BlockSpec((K, N), lambda i: (0, 0)),   # weights stay resident
            pl.BlockSpec((1, N), lambda i: (0, 0)),
        ],
        out_specs=pl.BlockSpec((tm, N), lambda i: (i, 0)),
        compiler_params=pltpu.CompilerParams(dimension_semantics=("parallel",)),
    )(x_bf16, w_bf16, b2)


# ----------------------------------------------------------------------------
# Kernel 2: fused GENConv stack -> (N, (L+1)*H) concatenation slab
# ----------------------------------------------------------------------------
def gcn_stack_forward(x0, G, V, gp, masks, ts, ln_eps=1e-5, msg_eps=1e-7):
    """gp: dict of per-layer params stacked on a leading layer axis.
       G:(Dmax*N, N) bf16 slot-gather one-hot rows, V:(Dmax, N, 1) slot validity.
       masks: (L-1, 1, H) node-dropout masks.  ts: per-layer temperatures (floats)."""
    Nn, H = x0.shape
    Dmax = G.shape[0] // Nn
    L = gp["W1"].shape[0]
    CAT = (L + 1) * H

    Gb = G.astype(jnp.bfloat16)
    W1 = gp["W1"].astype(jnp.bfloat16)        # review: bf16 weights, f32 accumulation
    W2 = gp["W2"].astype(jnp.bfloat16)
    b1, mg, mb = gp["b1"], gp["mlp_g"], gp["mlp_b"]
    b2, og, ob = gp["b2"], gp["out_g"], gp["out_b"]

    def genconv(xin, gmat, v_ref, w1, bb1, g1, bt1, w2, bb2, t):
        # Gather every in-neighbour slot with ONE (Dmax*N, N) @ (N, H) MXU pass.
        gat = jnp.dot(gmat, xin.astype(jnp.bfloat16),
                      preferred_element_type=jnp.float32)              # (Dmax*N, H)
        msgs, logits = [], []
        for s in range(Dmax):
            m = jnp.maximum(gat[s * Nn:(s + 1) * Nn, :], 0.0) + msg_eps
            msgs.append(m)
            logits.append(m * t)
        # Exact per-destination max shift (numerically robust scatter_softmax).
        neg = jnp.float32(-1e30)
        mx = None
        for s in range(Dmax):
            ls = jnp.where(v_ref[s] > 0.0, logits[s], neg)
            mx = ls if mx is None else jnp.maximum(mx, ls)
        mx = jnp.maximum(mx, 0.0)              # isolated-dst guard: keep exp() in range
        den = jnp.zeros((Nn, H), jnp.float32)
        num = jnp.zeros((Nn, H), jnp.float32)
        for s in range(Dmax):
            ew = jnp.where(v_ref[s] > 0.0, jnp.exp(logits[s] - mx), 0.0)
            den = den + ew
            num = num + ew * msgs[s]
        agg = jnp.where(den > 0.0, num / jnp.maximum(den, 1e-38), 0.0)  # exact divide
        h = agg + xin
        # GENConv MLP: Lin(H,2H) -> LayerNorm -> ReLU -> (Dropout=id) -> Lin(2H,H)
        h1 = jnp.dot(h.astype(jnp.bfloat16), w1,
                     preferred_element_type=jnp.float32) + bb1
        mu = jnp.mean(h1, axis=-1, keepdims=True)
        var = jnp.mean((h1 - mu) ** 2, axis=-1, keepdims=True)
        h1 = (h1 - mu) * jax.lax.rsqrt(var + ln_eps) * g1 + bt1
        h1 = jnp.maximum(h1, 0.0)
        return jnp.dot(h1.astype(jnp.bfloat16), w2,
                       preferred_element_type=jnp.float32) + bb2

    def kernel(x_ref, g_ref, v_ref, w1_ref, b1_ref, g1_ref, bt1_ref,
               w2_ref, b2_ref, og_ref, ob_ref, mk_ref, cat_ref):
        x0v = x_ref[...]
        gmat = g_ref[...]
        pieces = [x0v]
        # layer 0: GENConv only (PatchGCN calls .conv directly: no norm/act/res/mask)
        x = genconv(x0v, gmat, v_ref, w1_ref[0], b1_ref[0], g1_ref[0], bt1_ref[0],
                    w2_ref[0], b2_ref[0], ts[0])
        pieces.append(x)
        # layers 1..L-1: node-dropout mask -> GENConv -> LayerNorm -> ReLU -> +residual
        for li in range(1, L):
            xd = x * mk_ref[li - 1]
            c = genconv(xd, gmat, v_ref, w1_ref[li], b1_ref[li], g1_ref[li],
                        bt1_ref[li], w2_ref[li], b2_ref[li], ts[li])
            mu = jnp.mean(c, axis=-1, keepdims=True)
            var = jnp.mean((c - mu) ** 2, axis=-1, keepdims=True)
            y = (c - mu) * jax.lax.rsqrt(var + ln_eps) * og_ref[li - 1] + ob_ref[li - 1]
            x = jnp.maximum(y, 0.0) + xd
            pieces.append(x)
        # Single lane-dense (N, (L+1)*H = 128) store instead of four 32-lane writes.
        cat_ref[...] = jnp.concatenate(pieces, axis=-1)

    def full(shape):
        return pl.BlockSpec(shape, lambda i, _n=len(shape): (0,) * _n)

    operands = (x0, Gb, V, W1, b1, mg, mb, W2, b2, og, ob, masks)
    # TODO(synk): for real WSI graph sizes replace the one-hot slot-gather matmuls with
    # scalar-prefetched src/dst index tables + edge/node-tiled gathers so VMEM stays
    # O(E) and the node axis can be row-tiled / megacore-parallelized.
    return pl.pallas_call(
        kernel,
        out_shape=jax.ShapeDtypeStruct((Nn, CAT), jnp.float32),
        grid=(1,),
        in_specs=[full(a.shape) for a in operands],
        out_specs=full((Nn, CAT)),
        compiler_params=pltpu.CompilerParams(
            dimension_semantics=("arbitrary",),
            vmem_limit_bytes=_vmem_limit(
                list(operands) + [jax.ShapeDtypeStruct((Nn, CAT), jnp.float32)]),
        ),
    )(*operands)


# ----------------------------------------------------------------------------
# Kernel 3: fused head, row-tiled with online-softmax pooling
# ----------------------------------------------------------------------------
def head_forward(h_cat, p):
    Nn, F = h_cat.shape
    D = p["attn_Wa"].shape[1]
    tm = _row_tile(Nn, cap=256)
    n_tiles = Nn // tm

    x_bf = h_cat.astype(jnp.bfloat16)
    phiW = p["phi_W"].astype(jnp.bfloat16)
    phib = p["phi_b"].reshape(1, F).astype(jnp.float32)
    # review: fuse Wa|Wb into one (F, 2D = 256) matmul -> fills the 256-wide MXU output
    Wab = jnp.concatenate([p["attn_Wa"], p["attn_Wb"]], axis=1).astype(jnp.bfloat16)
    bab = jnp.concatenate([p["attn_ba"], p["attn_bb"]]).reshape(1, 2 * D).astype(jnp.float32)
    wc = p["attn_Wc"].astype(jnp.bfloat16)
    bc = p["attn_bc"].reshape(1, 1).astype(jnp.float32)
    rhoW = p["rho_W"].astype(jnp.bfloat16)
    rhob = p["rho_b"].reshape(1, F).astype(jnp.float32)
    rkW = p["risk_W"].astype(jnp.bfloat16)
    rkb = p["risk_b"].reshape(1, 1).astype(jnp.float32)

    def kernel(x_ref, pw_ref, pb_ref, wab_ref, bab_ref, wc_ref, bc_ref,
               rw_ref, rb_ref, kw_ref, kb_ref, a_ref, risk_ref,
               m_sc, l_sc, acc_sc):
        i = pl.program_id(0)

        @pl.when(i == 0)
        def _():
            m_sc[...] = jnp.full_like(m_sc, -jnp.inf)
            l_sc[...] = jnp.zeros_like(l_sc)
            acc_sc[...] = jnp.zeros_like(acc_sc)

        # path_phi: Linear + ReLU (Dropout = eval identity)
        h = jnp.maximum(
            jnp.dot(x_ref[...], pw_ref[...], preferred_element_type=jnp.float32)
            + pb_ref[...], 0.0)                                            # (tm, F)
        # gated attention: one fused bf16 matmul, split into tanh / sigmoid halves
        z = jnp.dot(h.astype(jnp.bfloat16), wab_ref[...],
                    preferred_element_type=jnp.float32) + bab_ref[...]     # (tm, 2D)
        a = jnp.tanh(z[:, :D])
        g = 1.0 / (1.0 + jnp.exp(-z[:, D:]))
        A = jnp.dot((a * g).astype(jnp.bfloat16), wc_ref[...],
                    preferred_element_type=jnp.float32) + bc_ref[...]      # (tm, 1)
        a_ref[...] = A
        # online softmax pooling over node tiles (single graph -> one segment)
        m_prev = m_sc[...]
        m_new = jnp.maximum(m_prev, jnp.max(A, axis=0, keepdims=True))
        corr = jnp.exp(m_prev - m_new)
        pvec = jnp.exp(A - m_new)                                          # (tm, 1)
        l_sc[...] = corr * l_sc[...] + jnp.sum(pvec, axis=0, keepdims=True)
        acc_sc[...] = corr * acc_sc[...] + jnp.sum(h * pvec, axis=0, keepdims=True)
        m_sc[...] = m_new

        @pl.when(i == pl.num_programs(0) - 1)
        def _():
            pooled = acc_sc[...] / l_sc[...]                               # (1, F)
            hr = jnp.maximum(
                jnp.dot(pooled.astype(jnp.bfloat16), rw_ref[...],
                        preferred_element_type=jnp.float32) + rb_ref[...], 0.0)
            risk_ref[...] = (
                jnp.dot(hr.astype(jnp.bfloat16), kw_ref[...],
                        preferred_element_type=jnp.float32) + kb_ref[...])

    def resident(shape):
        return pl.BlockSpec(shape, lambda i, _n=len(shape): (0,) * _n)

    operands = (x_bf, phiW, phib, Wab, bab, wc, bc, rhoW, rhob, rkW, rkb)
    # TODO(synk): emit the attention logits lane-dense ((1, N) row) once N is large
    # enough for the per-tile (tm, 1) masked stores to matter.
    return pl.pallas_call(
        kernel,
        out_shape=(jax.ShapeDtypeStruct((Nn, 1), jnp.float32),
                   jax.ShapeDtypeStruct((1, 1), jnp.float32)),
        grid=(n_tiles,),
        in_specs=[pl.BlockSpec((tm, F), lambda i: (i, 0))]
                 + [resident(a.shape) for a in operands[1:]],
        out_specs=(pl.BlockSpec((tm, 1), lambda i: (i, 0)),
                   pl.BlockSpec((1, 1), lambda i: (0, 0))),
        scratch_shapes=[pltpu.VMEM((1, 1), jnp.float32),
                        pltpu.VMEM((1, 1), jnp.float32),
                        pltpu.VMEM((1, F), jnp.float32)],
        compiler_params=pltpu.CompilerParams(
            dimension_semantics=("arbitrary",),   # online accumulation is sequential
            vmem_limit_bytes=_vmem_limit(
                list(operands[1:]) + [
                    jax.ShapeDtypeStruct((tm, F), jnp.bfloat16),
                    jax.ShapeDtypeStruct((tm, 2 * D), jnp.float32),
                    jax.ShapeDtypeStruct((Nn, 1), jnp.float32)]),
        ),
    )(*operands)


# ----------------------------------------------------------------------------
# Model composition
# ----------------------------------------------------------------------------
def patchgcn_forward(params, x_in_bf16, G, V, masks):
    x0 = fc_forward(x_in_bf16, params["fc_W"], params["fc_b"])                 # (N, H)
    x_cat = gcn_stack_forward(x0, G, V, params["gcn"], masks, params["t"])     # (N, 4H)
    A, risk = head_forward(x_cat, params)                                      # (N,1), (1,1)
    return risk.reshape(-1), A.reshape(1, -1)                                  # (1,), (1,N)


def init_linear(key, fan_in, fan_out):
    k1, k2 = jax.random.split(key)
    lim = 1.0 / jnp.sqrt(jnp.float32(fan_in))
    W = jax.random.uniform(k1, (fan_in, fan_out), minval=-lim, maxval=lim, dtype=jnp.float32)
    b = jax.random.uniform(k2, (fan_out,), minval=-lim, maxval=lim, dtype=jnp.float32)
    return W, b


if __name__ == "__main__":
    # Argument = {initial_dim: 8, attention_head_num: 4, number_of_layers: 3, dropout_rate: 0.25}
    N_NODES = 16
    IN_DIM = 1536
    HIDDEN = 8 * 4            # 32
    NUM_LAYERS = 3
    DROPOUT = 0.25
    CAT = HIDDEN * (NUM_LAYERS + 1)   # 128 -> lane-dense slab

    key = jax.random.PRNGKey(0)
    keys = iter(jax.random.split(key, 64))

    # ---- graph: bidirectional ring (every node has in-degree 2) ----
    idx = np.arange(N_NODES)
    src = np.concatenate([idx, (idx + 1) % N_NODES])
    dst = np.concatenate([(idx + 1) % N_NODES, idx])
    G, V, DMAX = build_slot_gather(src, dst, N_NODES)     # (2*N, N) bf16, (2, N, 1) f32

    # ---- node features (bf16 for the big fc matmul; f32 everywhere else) ----
    x_in = jax.random.normal(next(keys), (N_NODES, IN_DIM), dtype=jnp.float32)
    x_in_bf16 = x_in.astype(jnp.bfloat16)

    # ---- parameters ----
    params = {}
    fc_W, fc_b = init_linear(next(keys), IN_DIM, HIDDEN)
    params["fc_W"], params["fc_b"] = fc_W.astype(jnp.bfloat16), fc_b

    W1s, b1s, mgs, mbs, W2s, b2s, ogs, obs = [], [], [], [], [], [], [], []
    for li in range(NUM_LAYERS):
        W1, b1 = init_linear(next(keys), HIDDEN, 2 * HIDDEN)
        W2, b2 = init_linear(next(keys), 2 * HIDDEN, HIDDEN)
        W1s.append(W1); b1s.append(b1.reshape(1, -1))
        W2s.append(W2); b2s.append(b2.reshape(1, -1))
        mgs.append(jnp.ones((1, 2 * HIDDEN), jnp.float32))
        mbs.append(jnp.zeros((1, 2 * HIDDEN), jnp.float32))
        if li >= 1:
            ogs.append(jnp.ones((1, HIDDEN), jnp.float32))
            obs.append(jnp.zeros((1, HIDDEN), jnp.float32))
    params["gcn"] = dict(
        W1=jnp.stack(W1s), b1=jnp.stack(b1s),
        mlp_g=jnp.stack(mgs), mlp_b=jnp.stack(mbs),
        W2=jnp.stack(W2s), b2=jnp.stack(b2s),
        out_g=jnp.stack(ogs), out_b=jnp.stack(obs),
    )
    params["t"] = tuple(1.0 for _ in range(NUM_LAYERS))   # learn_t init value

    params["phi_W"], params["phi_b"] = init_linear(next(keys), CAT, CAT)
    params["attn_Wa"], params["attn_ba"] = init_linear(next(keys), CAT, CAT)
    params["attn_Wb"], params["attn_bb"] = init_linear(next(keys), CAT, CAT)
    params["attn_Wc"], params["attn_bc"] = init_linear(next(keys), CAT, 1)
    params["rho_W"], params["rho_b"] = init_linear(next(keys), CAT, CAT)
    params["risk_W"], params["risk_b"] = init_linear(next(keys), CAT, 1)

    # ---- node-dropout bernoulli masks (deterministic keys), layers 1..L-1 ----
    node_masks = jnp.stack([
        jax.random.bernoulli(next(keys), 1.0 - DROPOUT, (1, HIDDEN)).astype(jnp.float32)
        for _ in range(NUM_LAYERS - 1)
    ])
    # TODO(synk): nn.Dropout / F.dropout layers are eval-mode identity here (no train RNG).

    risk, A_path = patchgcn_forward(params, x_in_bf16, G, V, node_masks)
    risk = jax.block_until_ready(risk)
    A_path = jax.block_until_ready(A_path)

    assert risk.shape == (1,)
    assert A_path.shape == (1, N_NODES)
    assert bool(jnp.all(jnp.isfinite(risk))) and bool(jnp.all(jnp.isfinite(A_path)))
    print("KERNEL_OK")
</pallas_src>

<mosaic_0001>
module attributes {stable_mosaic.version = 11 : i64} {
  func.func @kernel(%arg0: i32, %arg1: memref<16x1536xbf16, #tpu.memory_space<vmem>>, %arg2: memref<1536x32xbf16, #tpu.memory_space<vmem>>, %arg3: memref<1x32xf32, #tpu.memory_space<vmem>>, %arg4: memref<16x32xf32, #tpu.memory_space<vmem>>) attributes {dimension_semantics = [#tpu.dimension_semantics<parallel>], iteration_bounds = array<i64: 1>, scalar_prefetch = 0 : i64, scratch_operands = 0 : i64, tpu.core_type = #tpu.core_type<tc>, window_params = [{transform_indices = @transform_0, window_bounds = array<i64: 16, 1536>}, {pipeline_mode = #tpu.pipeline_mode<synchronous>, transform_indices = @transform_1, window_bounds = array<i64: 1536, 32>}, {pipeline_mode = #tpu.pipeline_mode<synchronous>, transform_indices = @transform_2, window_bounds = array<i64: 1, 32>}, {transform_indices = @transform_3, window_bounds = array<i64: 16, 32>}]} {
    %c0 = arith.constant 0 : index
    %c0_0 = arith.constant 0 : index
    %0 = vector.load %arg1[%c0, %c0_0] : memref<16x1536xbf16, #tpu.memory_space<vmem>>, vector<16x1536xbf16>
    %c0_1 = arith.constant 0 : index
    %c0_2 = arith.constant 0 : index
    %1 = vector.load %arg2[%c0_1, %c0_2] : memref<1536x32xbf16, #tpu.memory_space<vmem>>, vector<1536x32xbf16>
    %cst = arith.constant dense<0.000000e+00> : vector<16x32xf32>
    %2 = tpu.matmul %0, %1, %cst {dimension_numbers = #tpu.dot_dimension_numbers<[1], [0], [0], [1], [0, 0, 1, 1], [], []>} : vector<16x1536xbf16>, vector<1536x32xbf16>, vector<16x32xf32> -> vector<16x32xf32>
    %c0_3 = arith.constant 0 : index
    %c0_4 = arith.constant 0 : index
    %3 = vector.load %arg3[%c0_3, %c0_4] : memref<1x32xf32, #tpu.memory_space<vmem>>, vector<1x32xf32>
    %4 = vector.broadcast %3 : vector<1x32xf32> to vector<16x32xf32>
    %5 = arith.addf %2, %4 : vector<16x32xf32>
    %cst_5 = arith.constant 0.000000e+00 : f32
    %6 = vector.broadcast %cst_5 : f32 to vector<16x32xf32>
    %7 = arith.maximumf %5, %6 : vector<16x32xf32>
    %c0_6 = arith.constant 0 : index
    %c0_7 = arith.constant 0 : index
    %8 = vector.load %arg4[%c0_6, %c0_7] : memref<16x32xf32, #tpu.memory_space<vmem>>, vector<16x32xf32>
    tpu.vector_store %arg4[%c0_6, %c0_7], %7 {strides = array<i32>} : memref<16x32xf32, #tpu.memory_space<vmem>>, vector<16x32xf32>,
    return
  }
  func.func @transform_0(%arg0: i32) -> (i32, i32) {
    %c0_i32 = arith.constant 0 : i32
    %c0_i32_0 = arith.constant 0 : i32
    return %arg0, %c0_i32 : i32, i32
  }
  func.func @transform_1(%arg0: i32) -> (i32, i32) {
    %c0_i32 = arith.constant 0 : i32
    %c0_i32_0 = arith.constant 0 : i32
    %c0_i32_1 = arith.constant 0 : i32
    return %c0_i32, %c0_i32_0 : i32, i32
  }
  func.func @transform_2(%arg0: i32) -> (i32, i32) {
    %c0_i32 = arith.constant 0 : i32
    %c0_i32_0 = arith.constant 0 : i32
    %c0_i32_1 = arith.constant 0 : i32
    return %c0_i32, %c0_i32_0 : i32, i32
  }
  func.func @transform_3(%arg0: i32) -> (i32, i32) {
    %c0_i32 = arith.constant 0 : i32
    %c0_i32_0 = arith.constant 0 : i32
    return %arg0, %c0_i32 : i32, i32
  }
}

</mosaic_0001>

<llo_original>
// kernel: tpu_custom_call.1
$region0: #{tpu_custom_call.1}
  #allocation0 [shape = 'u32[]', space=smem, size = 0x4, offset = 0x4, fixed_abs, tag = 'smem constant byte address 0x4 - core index']
  #allocation1 [shape = 'u32[144,128]{1,0:T(1,128)}', space=vmem, size = 0x12000, scoped, tag = 'internal scratch']
  %s0 = inlined_call_operand.vmem [shape: bf16[16,1536], index: 0, kind: input, shape index: {}]
  %s1 = inlined_call_operand.vmem [shape: bf16[1536,32], index: 1, kind: input, shape index: {}]
  %s2 = inlined_call_operand.vmem [shape: f32[1,32], index: 2, kind: input, shape index: {}]
  %s3 = inlined_call_operand.hbm [shape: f32[16,32], index: 3, kind: output, shape index: {}]
  %s4 = sld [smem:[#allocation0]]
  $region22: #{tpu_custom_call.1} parent=0
    _
  %s6 = ssub.s32 1, %s4
  %s7 = scalar_select 0, %s6, %s4
  $region1: #{tpu_custom_call.1} parent=0
    #allocation2 [shape = 'u8[8192]{0}', space=vmem, size = 0x2000, scoped, tag = 'output window, operand 0, single buffered']
    #allocation3 [shape = 's32[1]{0}', space=sflag, size = 0x4, scoped, tag = 'scoped memory for tpu_custom_call.1']
    %8 = vsyncpa [#allocation3], 0
    // Predicated region
    $region2: #{tpu_custom_call.1} parent=1 // pred_check
      _
    $region3: #{tpu_custom_call.1} parent=1 // pred_check_branch
      %10 = sbr.rel (0) target = $region5
    $region4: #{tpu_custom_call.1} parent=1 // pred_region
      _
    $region5: #{tpu_custom_call.1} parent=1 // pred_fallthru
      _
    // Predicated region
    $region6: #{tpu_custom_call.1} parent=1 // pred_check
      _
    $region7: #{tpu_custom_call.1} parent=1 // pred_check_branch
      %12 = sbr.rel (0) target = $region9
    $region8: #{tpu_custom_call.1} parent=1 // pred_region
      _
    $region9: #{tpu_custom_call.1} parent=1 // pred_fallthru
      _
    // Predicated region
    $region10: #{tpu_custom_call.1} parent=1 // pred_check
      _
    $region11: #{tpu_custom_call.1} parent=1 // pred_check_branch
      %14 = sbr.rel (0) target = $region13
    $region12: #{tpu_custom_call.1} parent=1 // pred_region
      _
    $region13: #{tpu_custom_call.1} parent=1 // pred_fallthru
      _
    %v16 = vld [vmem:[%s0] sm:$0xff]
    %v17 = vld [vmem:[%s0 + $0x8] sm:$0xff]
    %v18 = vld [vmem:[%s0 + $0x10] sm:$0xff]
    %v19 = vld [vmem:[%s0 + $0x18] sm:$0xff]
    %v20 = vld [vmem:[%s0 + $0x20] sm:$0xff]
    %v21 = vld [vmem:[%s0 + $0x28] sm:$0xff]
    %v22 = vld [vmem:[%s0 + $0x30] sm:$0xff]
    %v23 = vld [vmem:[%s0 + $0x38] sm:$0xff]
    %v24 = vld [vmem:[%s0 + $0x40] sm:$0xff]
    %v25 = vld [vmem:[%s0 + $0x48] sm:$0xff]
    %v26 = vld [vmem:[%s0 + $0x50] sm:$0xff]
    %v27 = vld [vmem:[%s0 + $0x58] sm:$0xff]
    %v28 = vld [vmem:[%s1] sm:$0xf]
    %v29 = vld [vmem:[%s1 + $0x4] sm:$0xf]
    %v30 = vld [vmem:[%s1 + $0x8] sm:$0xf]
    %v31 = vld [vmem:[%s1 + $0xc] sm:$0xf]
    %v32 = vld [vmem:[%s1 + $0x10] sm:$0xf]
    %v33 = vld [vmem:[%s1 + $0x14] sm:$0xf]
    %v34 = vld [vmem:[%s1 + $0x18] sm:$0xf]
    %v35 = vld [vmem:[%s1 + $0x1c] sm:$0xf]
    %v36 = vld [vmem:[%s1 + $0x20] sm:$0xf]
    %v37 = vld [vmem:[%s1 + $0x24] sm:$0xf]
    %v38 = vld [vmem:[%s1 + $0x28] sm:$0xf]
    %v39 = vld [vmem:[%s1 + $0x2c] sm:$0xf]
    %v40 = vld [vmem:[%s1 + $0x30] sm:$0xf]
    %v41 = vld [vmem:[%s1 + $0x34] sm:$0xf]
    %v42 = vld [vmem:[%s1 + $0x38] sm:$0xf]
    %v43 = vld [vmem:[%s1 + $0x3c] sm:$0xf]
    %v44 = vld [vmem:[%s1 + $0x40] sm:$0xf]
    %v45 = vld [vmem:[%s1 + $0x44] sm:$0xf]
    %v46 = vld [vmem:[%s1 + $0x48] sm:$0xf]
    %v47 = vld [vmem:[%s1 + $0x4c] sm:$0xf]
    %v48 = vld [vmem:[%s1 + $0x50] sm:$0xf]
    %v49 = vld [vmem:[%s1 + $0x54] sm:$0xf]
    %v50 = vld [vmem:[%s1 + $0x58] sm:$0xf]
    %v51 = vld [vmem:[%s1 + $0x5c] sm:$0xf]
    %v52 = vld [vmem:[%s1 + $0x60] sm:$0xf]
    %v53 = vld [vmem:[%s1 + $0x64] sm:$0xf]
    %v54 = vld [vmem:[%s1 + $0x68] sm:$0xf]
    %v55 = vld [vmem:[%s1 + $0x6c] sm:$0xf]
    %v56 = vld [vmem:[%s1 + $0x70] sm:$0xf]
    %v57 = vld [vmem:[%s1 + $0x74] sm:$0xf]
    %v58 = vld [vmem:[%s1 + $0x78] sm:$0xf]
    %v59 = vld [vmem:[%s1 + $0x7c] sm:$0xf]
    %v60 = vld [vmem:[%s1 + $0x80] sm:$0xf]
    %v61 = vld [vmem:[%s1 + $0x84] sm:$0xf]
    %v62 = vld [vmem:[%s1 + $0x88] sm:$0xf]
    %v63 = vld [vmem:[%s1 + $0x8c] sm:$0xf]
    %v64 = vld [vmem:[%s1 + $0x90] sm:$0xf]
    %v65 = vld [vmem:[%s1 + $0x94] sm:$0xf]
    %v66 = vld [vmem:[%s1 + $0x98] sm:$0xf]
    %v67 = vld [vmem:[%s1 + $0x9c] sm:$0xf]
    %v68 = vld [vmem:[%s1 + $0xa0] sm:$0xf]
    %v69 = vld [vmem:[%s1 + $0xa4] sm:$0xf]
    %v70 = vld [vmem:[%s1 + $0xa8] sm:$0xf]
    %v71 = vld [vmem:[%s1 + $0xac] sm:$0xf]
    %v72 = vld [vmem:[%s1 + $0xb0] sm:$0xf]
    %v73 = vld [vmem:[%s1 + $0xb4] sm:$0xf]
    %v74 = vld [vmem:[%s1 + $0xb8] sm:$0xf]
    %v75 = vld [vmem:[%s1 + $0xbc] sm:$0xf]
    %v76 = vld [vmem:[%s1 + $0xc0] sm:$0xf]
    %v77 = vld [vmem:[%s1 + $0xc4] sm:$0xf]
    %v78 = vld [vmem:[%s1 + $0xc8] sm:$0xf]
    %v79 = vld [vmem:[%s1 + $0xcc] sm:$0xf]
    %v80 = vld [vmem:[%s1 + $0xd0] sm:$0xf]
    %v81 = vld [vmem:[%s1 + $0xd4] sm:$0xf]
    %v82 = vld [vmem:[%s1 + $0xd8] sm:$0xf]
    %v83 = vld [vmem:[%s1 + $0xdc] sm:$0xf]
    %v84 = vld [vmem:[%s1 + $0xe0] sm:$0xf]
    %v85 = vld [vmem:[%s1 + $0xe4] sm:$0xf]
    %v86 = vld [vmem:[%s1 + $0xe8] sm:$0xf]
    %v87 = vld [vmem:[%s1 + $0xec] sm:$0xf]
    %v88 = vld [vmem:[%s1 + $0xf0] sm:$0xf]
    %v89 = vld [vmem:[%s1 + $0xf4] sm:$0xf]
    %v90 = vld [vmem:[%s1 + $0xf8] sm:$0xf]
    %v91 = vld [vmem:[%s1 + $0xfc] sm:$0xf]
    %v92 = vld [vmem:[%s1 + $0x100] sm:$0xf]
    %v93 = vld [vmem:[%s1 + $0x104] sm:$0xf]
    %v94 = vld [vmem:[%s1 + $0x108] sm:$0xf]
    %v95 = vld [vmem:[%s1 + $0x10c] sm:$0xf]
    %v96 = vld [vmem:[%s1 + $0x110] sm:$0xf]
    %v97 = vld [vmem:[%s1 + $0x114] sm:$0xf]
    %v98 = vld [vmem:[%s1 + $0x118] sm:$0xf]
    %v99 = vld [vmem:[%s1 + $0x11c] sm:$0xf]
    %v100 = vld [vmem:[%s1 + $0x120] sm:$0xf]
    %v101 = vld [vmem:[%s1 + $0x124] sm:$0xf]
    %v102 = vld [vmem:[%s1 + $0x128] sm:$0xf]
    %v103 = vld [vmem:[%s1 + $0x12c] sm:$0xf]
    %v104 = vld [vmem:[%s1 + $0x130] sm:$0xf]
    %v105 = vld [vmem:[%s1 + $0x134] sm:$0xf]
    %v106 = vld [vmem:[%s1 + $0x138] sm:$0xf]
    %v107 = vld [vmem:[%s1 + $0x13c] sm:$0xf]
    %v108 = vld [vmem:[%s1 + $0x140] sm:$0xf]
    %v109 = vld [vmem:[%s1 + $0x144] sm:$0xf]
    %v110 = vld [vmem:[%s1 + $0x148] sm:$0xf]
    %v111 = vld [vmem:[%s1 + $0x14c] sm:$0xf]
    %v112 = vld [vmem:[%s1 + $0x150] sm:$0xf]
    %v113 = vld [vmem:[%s1 + $0x154] sm:$0xf]
    %v114 = vld [vmem:[%s1 + $0x158] sm:$0xf]
    %v115 = vld [vmem:[%s1 + $0x15c] sm:$0xf]
    %v116 = vld [vmem:[%s1 + $0x160] sm:$0xf]
    %v117 = vld [vmem:[%s1 + $0x164] sm:$0xf]
    %v118 = vld [vmem:[%s1 + $0x168] sm:$0xf]
    %v119 = vld [vmem:[%s1 + $0x16c] sm:$0xf]
    %v120 = vld [vmem:[%s1 + $0x170] sm:$0xf]
    %v121 = vld [vmem:[%s1 + $0x174] sm:$0xf]
    %v122 = vld [vmem:[%s1 + $0x178] sm:$0xf]
    %v123 = vld [vmem:[%s1 + $0x17c] sm:$0xf]
    %v124 = vld [vmem:[%s1 + $0x180] sm:$0xf]
    %v125 = vld [vmem:[%s1 + $0x184] sm:$0xf]
    %v126 = vld [vmem:[%s1 + $0x188] sm:$0xf]
    %v127 = vld [vmem:[%s1 + $0x18c] sm:$0xf]
    %v128 = vld [vmem:[%s1 + $0x190] sm:$0xf]
    %v129 = vld [vmem:[%s1 + $0x194] sm:$0xf]
    %v130 = vld [vmem:[%s1 + $0x198] sm:$0xf]
    %v131 = vld [vmem:[%s1 + $0x19c] sm:$0xf]
    %v132 = vld [vmem:[%s1 + $0x1a0] sm:$0xf]
    %v133 = vld [vmem:[%s1 + $0x1a4] sm:$0xf]
    %v134 = vld [vmem:[%s1 + $0x1a8] sm:$0xf]
    %v135 = vld [vmem:[%s1 + $0x1ac] sm:$0xf]
    %v136 = vld [vmem:[%s1 + $0x1b0] sm:$0xf]
    %v137 = vld [vmem:[%s1 + $0x1b4] sm:$0xf]
    %v138 = vld [vmem:[%s1 + $0x1b8] sm:$0xf]
    %v139 = vld [vmem:[%s1 + $0x1bc] sm:$0xf]
    %v140 = vld [vmem:[%s1 + $0x1c0] sm:$0xf]
    %v141 = vld [vmem:[%s1 + $0x1c4] sm:$0xf]
    %v142 = vld [vmem:[%s1 + $0x1c8] sm:$0xf]
    %v143 = vld [vmem:[%s1 + $0x1cc] sm:$0xf]
    %v144 = vld [vmem:[%s1 + $0x1d0] sm:$0xf]
    %v145 = vld [vmem:[%s1 + $0x1d4] sm:$0xf]
    %v146 = vld [vmem:[%s1 + $0x1d8] sm:$0xf]
    %v147 = vld [vmem:[%s1 + $0x1dc] sm:$0xf]
    %v148 = vld [vmem:[%s1 + $0x1e0] sm:$0xf]
    %v149 = vld [vmem:[%s1 + $0x1e4] sm:$0xf]
    %v150 = vld [vmem:[%s1 + $0x1e8] sm:$0xf]
    %v151 = vld [vmem:[%s1 + $0x1ec] sm:$0xf]
    %v152 = vld [vmem:[%s1 + $0x1f0] sm:$0xf]
    %v153 = vld [vmem:[%s1 + $0x1f4] sm:$0xf]
    %v154 = vld [vmem:[%s1 + $0x1f8] sm:$0xf]
    %v155 = vld [vmem:[%s1 + $0x1fc] sm:$0xf]
    %v156 = vld [vmem:[%s1 + $0x200] sm:$0xf]
    %v157 = vld [vmem:[%s1 + $0x204] sm:$0xf]
    %v158 = vld [vmem:[%s1 + $0x208] sm:$0xf]
    %v159 = vld [vmem:[%s1 + $0x20c] sm:$0xf]
    %v160 = vld [vmem:[%s1 + $0x210] sm:$0xf]
    %v161 = vld [vmem:[%s1 + $0x214] sm:$0xf]
    %v162 = vld [vmem:[%s1 + $0x218] sm:$0xf]
    %v163 = vld [vmem:[%s1 + $0x21c] sm:$0xf]
    %v164 = vld [vmem:[%s1 + $0x220] sm:$0xf]
    %v165 = vld [vmem:[%s1 + $0x224] sm:$0xf]
    %v166 = vld [vmem:[%s1 + $0x228] sm:$0xf]
    %v167 = vld [vmem:[%s1 + $0x22c] sm:$0xf]
    %v168 = vld [vmem:[%s1 + $0x230] sm:$0xf]
    %v169 = vld [vmem:[%s1 + $0x234] sm:$0xf]
    %v170 = vld [vmem:[%s1 + $0x238] sm:$0xf]
    %v171 = vld [vmem:[%s1 + $0x23c] sm:$0xf]
    %v172 = vld [vmem:[%s1 + $0x240] sm:$0xf]
    %v173 = vld [vmem:[%s1 + $0x244] sm:$0xf]
    %v174 = vld [vmem:[%s1 + $0x248] sm:$0xf]
    %v175 = vld [vmem:[%s1 + $0x24c] sm:$0xf]
    %v176 = vld [vmem:[%s1 + $0x250] sm:$0xf]
    %v177 = vld [vmem:[%s1 + $0x254] sm:$0xf]
    %v178 = vld [vmem:[%s1 + $0x258] sm:$0xf]
    %v179 = vld [vmem:[%s1 + $0x25c] sm:$0xf]
    %v180 = vld [vmem:[%s1 + $0x260] sm:$0xf]
    %v181 = vld [vmem:[%s1 + $0x264] sm:$0xf]
    %v182 = vld [vmem:[%s1 + $0x268] sm:$0xf]
    %v183 = vld [vmem:[%s1 + $0x26c] sm:$0xf]
    %v184 = vld [vmem:[%s1 + $0x270] sm:$0xf]
    %v185 = vld [vmem:[%s1 + $0x274] sm:$0xf]
    %v186 = vld [vmem:[%s1 + $0x278] sm:$0xf]
    %v187 = vld [vmem:[%s1 + $0x27c] sm:$0xf]
    %v188 = vld [vmem:[%s1 + $0x280] sm:$0xf]
    %v189 = vld [vmem:[%s1 + $0x284] sm:$0xf]
    %v190 = vld [vmem:[%s1 + $0x288] sm:$0xf]
    %v191 = vld [vmem:[%s1 + $0x28c] sm:$0xf]
    %v192 = vld [vmem:[%s1 + $0x290] sm:$0xf]
    %v193 = vld [vmem:[%s1 + $0x294] sm:$0xf]
    %v194 = vld [vmem:[%s1 + $0x298] sm:$0xf]
    %v195 = vld [vmem:[%s1 + $0x29c] sm:$0xf]
    %v196 = vld [vmem:[%s1 + $0x2a0] sm:$0xf]
    %v197 = vld [vmem:[%s1 + $0x2a4] sm:$0xf]
    %v198 = vld [vmem:[%s1 + $0x2a8] sm:$0xf]
    %v199 = vld [vmem:[%s1 + $0x2ac] sm:$0xf]
    %v200 = vld [vmem:[%s1 + $0x2b0] sm:$0xf]
    %v201 = vld [vmem:[%s1 + $0x2b4] sm:$0xf]
    %v202 = vld [vmem:[%s1 + $0x2b8] sm:$0xf]
    %v203 = vld [vmem:[%s1 + $0x2bc] sm:$0xf]
    %v204 = vld [vmem:[%s1 + $0x2c0] sm:$0xf]
    %v205 = vld [vmem:[%s1 + $0x2c4] sm:$0xf]
    %v206 = vld [vmem:[%s1 + $0x2c8] sm:$0xf]
    %v207 = vld [vmem:[%s1 + $0x2cc] sm:$0xf]
    %v208 = vld [vmem:[%s1 + $0x2d0] sm:$0xf]
    %v209 = vld [vmem:[%s1 + $0x2d4] sm:$0xf]
    %v210 = vld [vmem:[%s1 + $0x2d8] sm:$0xf]
    %v211 = vld [vmem:[%s1 + $0x2dc] sm:$0xf]
    %v212 = vld [vmem:[%s1 + $0x2e0] sm:$0xf]
    %v213 = vld [vmem:[%s1 + $0x2e4] sm:$0xf]
    %v214 = vld [vmem:[%s1 + $0x2e8] sm:$0xf]
    %v215 = vld [vmem:[%s1 + $0x2ec] sm:$0xf]
    %v216 = vld [vmem:[%s1 + $0x2f0] sm:$0xf]
    %v217 = vld [vmem:[%s1 + $0x2f4] sm:$0xf]
    %v218 = vld [vmem:[%s1 + $0x2f8] sm:$0xf]
    %v219 = vld [vmem:[%s1 + $0x2fc] sm:$0xf]
    %v220 = vld [vmem:[%s2] sm:$0x1]
    %v222 = vlaneseq
    %v223 = vshrl.u32 %v222, 7
    %v224 = vsub.s32 0, %v223
    %v225 = vrot.slane %v220, %v224
    %v239 = vunpack.c.l.b16 %v16
    %v240 = vunpack.c.h.b16 %v16
    %v241 = vunpack.c.l.b16 %v17
    %v242 = vunpack.c.h.b16 %v17
    %v243 = vunpack.c.l.b16 %v18
    %v244 = vunpack.c.h.b16 %v18
    %v245 = vunpack.c.l.b16 %v19
    %v246 = vunpack.c.h.b16 %v19
    %v247 = vunpack.c.l.b16 %v20
    %v248 = vunpack.c.h.b16 %v20
    %v249 = vunpack.c.l.b16 %v21
    %v250 = vunpack.c.h.b16 %v21
    %v251 = vunpack.c.l.b16 %v22
    %v252 = vunpack.c.h.b16 %v22
    %v253 = vunpack.c.l.b16 %v23
    %v254 = vunpack.c.h.b16 %v23
    %v255 = vunpack.c.l.b16 %v24
    %v256 = vunpack.c.h.b16 %v24
    %v257 = vunpack.c.l.b16 %v25
    %v258 = vunpack.c.h.b16 %v25
    %v259 = vunpack.c.l.b16 %v26
    %v260 = vunpack.c.h.b16 %v26
    %v261 = vunpack.c.l.b16 %v27
    %v262 = vunpack.c.h.b16 %v27
    %v263 = vpack.c.b16 %v251, %v239
    %v264 = vpack.c.b16 %v252, %v240
    %v265 = vpack.c.b16 %v253, %v241
    %v266 = vpack.c.b16 %v254, %v242
    %v267 = vpack.c.b16 %v255, %v243
    %v268 = vpack.c.b16 %v256, %v244
    %v269 = vpack.c.b16 %v257, %v245
    %v270 = vpack.c.b16 %v258, %v246
    %v271 = vpack.c.b16 %v259, %v247
    %v272 = vpack.c.b16 %v260, %v248
    %v273 = vpack.c.b16 %v261, %v249
    %v274 = vpack.c.b16 %v262, %v250
    %v479 = vunpack.c.l.b16 %v28
    %v480 = vunpack.c.l.b16 %v29
    %v481 = vunpack.c.l.b16 %v30
    %v482 = vunpack.c.l.b16 %v31
    %v483 = vunpack.c.l.b16 %v32
    %v484 = vunpack.c.l.b16 %v33
    %v485 = vunpack.c.l.b16 %v34
    %v486 = vunpack.c.l.b16 %v35
    %v487 = vunpack.c.l.b16 %v36
    %v488 = vunpack.c.l.b16 %v37
    %v489 = vunpack.c.l.b16 %v38
    %v490 = vunpack.c.l.b16 %v39
    %v491 = vunpack.c.l.b16 %v40
    %v492 = vunpack.c.l.b16 %v41
    %v493 = vunpack.c.l.b16 %v42
    %v494 = vunpack.c.l.b16 %v43
    %v495 = vunpack.c.l.b16 %v44
    %v496 = vunpack.c.l.b16 %v45
    %v497 = vunpack.c.l.b16 %v46
    %v498 = vunpack.c.l.b16 %v47
    %v499 = vunpack.c.l.b16 %v48
    %v500 = vunpack.c.l.b16 %v49
    %v501 = vunpack.c.l.b16 %v50
    %v502 = vunpack.c.l.b16 %v51
    %v503 = vunpack.c.l.b16 %v52
    %v504 = vunpack.c.l.b16 %v53
    %v505 = vunpack.c.l.b16 %v54
    %v506 = vunpack.c.l.b16 %v55
    %v507 = vunpack.c.l.b16 %v56
    %v508 = vunpack.c.l.b16 %v57
    %v509 = vunpack.c.l.b16 %v58
    %v510 = vunpack.c.l.b16 %v59
    %v511 = vunpack.c.l.b16 %v60
    %v512 = vunpack.c.l.b16 %v61
    %v513 = vunpack.c.l.b16 %v62
    %v514 = vunpack.c.l.b16 %v63
    %v515 = vunpack.c.l.b16 %v64
    %v516 = vunpack.c.l.b16 %v65
    %v517 = vunpack.c.l.b16 %v66
    %v518 = vunpack.c.l.b16 %v67
    %v519 = vunpack.c.l.b16 %v68
    %v520 = vunpack.c.l.b16 %v69
    %v521 = vunpack.c.l.b16 %v70
    %v522 = vunpack.c.l.b16 %v71
    %v523 = vunpack.c.l.b16 %v72
    %v524 = vunpack.c.l.b16 %v73
    %v525 = vunpack.c.l.b16 %v74
    %v526 = vunpack.c.l.b16 %v75
    %v527 = vunpack.c.l.b16 %v76
    %v528 = vunpack.c.l.b16 %v77
    %v529 = vunpack.c.l.b16 %v78
    %v530 = vunpack.c.l.b16 %v79
    %v531 = vunpack.c.l.b16 %v80
    %v532 = vunpack.c.l.b16 %v81
    %v533 = vunpack.c.l.b16 %v82
    %v534 = vunpack.c.l.b16 %v83
    %v535 = vunpack.c.l.b16 %v84
    %v536 = vunpack.c.l.b16 %v85
    %v537 = vunpack.c.l.b16 %v86
    %v538 = vunpack.c.l.b16 %v87
    %v539 = vunpack.c.l.b16 %v88
    %v540 = vunpack.c.l.b16 %v89
    %v541 = vunpack.c.l.b16 %v90
    %v542 = vunpack.c.l.b16 %v91
    %v543 = vunpack.c.l.b16 %v92
    %v544 = vunpack.c.l.b16 %v93
    %v545 = vunpack.c.l.b16 %v94
    %v546 = vunpack.c.l.b16 %v95
    %v547 = vunpack.c.l.b16 %v96
    %v548 = vunpack.c.l.b16 %v97
    %v549 = vunpack.c.l.b16 %v98
    %v550 = vunpack.c.l.b16 %v99
    %v551 = vunpack.c.l.b16 %v100
    %v552 = vunpack.c.l.b16 %v101
    %v553 = vunpack.c.l.b16 %v102
    %v554 = vunpack.c.l.b16 %v103
    %v555 = vunpack.c.l.b16 %v104
    %v556 = vunpack.c.l.b16 %v105
    %v557 = vunpack.c.l.b16 %v106
    %v558 = vunpack.c.l.b16 %v107
    %v559 = vunpack.c.l.b16 %v108
    %v560 = vunpack.c.l.b16 %v109
    %v561 = vunpack.c.l.b16 %v110
    %v562 = vunpack.c.l.b16 %v111
    %v563 = vunpack.c.l.b16 %v112
    %v564 = vunpack.c.l.b16 %v113
    %v565 = vunpack.c.l.b16 %v114
    %v566 = vunpack.c.l.b16 %v115
    %v567 = vunpack.c.l.b16 %v116
    %v568 = vunpack.c.l.b16 %v117
    %v569 = vunpack.c.l.b16 %v118
    %v570 = vunpack.c.l.b16 %v119
    %v571 = vunpack.c.l.b16 %v120
    %v572 = vunpack.c.l.b16 %v121
    %v573 = vunpack.c.l.b16 %v122
    %v574 = vunpack.c.l.b16 %v123
    %v575 = vunpack.c.l.b16 %v124
    %v576 = vunpack.c.l.b16 %v125
    %v577 = vunpack.c.l.b16 %v126
    %v578 = vunpack.c.l.b16 %v127
    %v579 = vunpack.c.l.b16 %v128
    %v580 = vunpack.c.l.b16 %v129
    %v581 = vunpack.c.l.b16 %v130
    %v582 = vunpack.c.l.b16 %v131
    %v583 = vunpack.c.l.b16 %v132
    %v584 = vunpack.c.l.b16 %v133
    %v585 = vunpack.c.l.b16 %v134
    %v586 = vunpack.c.l.b16 %v135
    %v587 = vunpack.c.l.b16 %v136
    %v588 = vunpack.c.l.b16 %v137
    %v589 = vunpack.c.l.b16 %v138
    %v590 = vunpack.c.l.b16 %v139
    %v591 = vunpack.c.l.b16 %v140
    %v592 = vunpack.c.l.b16 %v141
    %v593 = vunpack.c.l.b16 %v142
    %v594 = vunpack.c.l.b16 %v143
    %v595 = vunpack.c.l.b16 %v144
    %v596 = vunpack.c.l.b16 %v145
    %v597 = vunpack.c.l.b16 %v146
    %v598 = vunpack.c.l.b16 %v147
    %v599 = vunpack.c.l.b16 %v148
    %v600 = vunpack.c.l.b16 %v149
    %v601 = vunpack.c.l.b16 %v150
    %v602 = vunpack.c.l.b16 %v151
    %v603 = vunpack.c.l.b16 %v152
    %v604 = vunpack.c.l.b16 %v153
    %v605 = vunpack.c.l.b16 %v154
    %v606 = vunpack.c.l.b16 %v155
    %v607 = vunpack.c.l.b16 %v156
    %v608 = vunpack.c.l.b16 %v157
    %v609 = vunpack.c.l.b16 %v158
    %v610 = vunpack.c.l.b16 %v159
    %v611 = vunpack.c.l.b16 %v160
    %v612 = vunpack.c.l.b16 %v161
    %v613 = vunpack.c.l.b16 %v162
    %v614 = vunpack.c.l.b16 %v163
    %v615 = vunpack.c.l.b16 %v164
    %v616 = vunpack.c.l.b16 %v165
    %v617 = vunpack.c.l.b16 %v166
    %v618 = vunpack.c.l.b16 %v167
    %v619 = vunpack.c.l.b16 %v168
    %v620 = vunpack.c.l.b16 %v169
    %v621 = vunpack.c.l.b16 %v170
    %v622 = vunpack.c.l.b16 %v171
    %v623 = vunpack.c.l.b16 %v172
    %v624 = vunpack.c.l.b16 %v173
    %v625 = vunpack.c.l.b16 %v174
    %v626 = vunpack.c.l.b16 %v175
    %v627 = vunpack.c.l.b16 %v176
    %v628 = vunpack.c.l.b16 %v177
    %v629 = vunpack.c.l.b16 %v178
    %v630 = vunpack.c.l.b16 %v179
    %v631 = vunpack.c.l.b16 %v180
    %v632 = vunpack.c.l.b16 %v181
    %v633 = vunpack.c.l.b16 %v182
    %v634 = vunpack.c.l.b16 %v183
    %v635 = vunpack.c.l.b16 %v184
    %v636 = vunpack.c.l.b16 %v185
    %v637 = vunpack.c.l.b16 %v186
    %v638 = vunpack.c.l.b16 %v187
    %v639 = vunpack.c.l.b16 %v188
    %v640 = vunpack.c.l.b16 %v189
    %v641 = vunpack.c.l.b16 %v190
    %v642 = vunpack.c.l.b16 %v191
    %v643 = vunpack.c.l.b16 %v192
    %v644 = vunpack.c.l.b16 %v193
    %v645 = vunpack.c.l.b16 %v194
    %v646 = vunpack.c.l.b16 %v195
    %v647 = vunpack.c.l.b16 %v196
    %v648 = vunpack.c.l.b16 %v197
    %v649 = vunpack.c.l.b16 %v198
    %v650 = vunpack.c.l.b16 %v199
    %v651 = vunpack.c.l.b16 %v200
    %v652 = vunpack.c.l.b16 %v201
    %v653 = vunpack.c.l.b16 %v202
    %v654 = vunpack.c.l.b16 %v203
    %v655 = vunpack.c.l.b16 %v204
    %v656 = vunpack.c.l.b16 %v205
    %v657 = vunpack.c.l.b16 %v206
    %v658 = vunpack.c.l.b16 %v207
    %v659 = vunpack.c.l.b16 %v208
    %v660 = vunpack.c.l.b16 %v209
    %v661 = vunpack.c.l.b16 %v210
    %v662 = vunpack.c.l.b16 %v211
    %v663 = vunpack.c.l.b16 %v212
    %v664 = vunpack.c.l.b16 %v213
    %v665 = vunpack.c.l.b16 %v214
    %v666 = vunpack.c.l.b16 %v215
    %v667 = vunpack.c.l.b16 %v216
    %v668 = vunpack.c.l.b16 %v217
    %v669 = vunpack.c.l.b16 %v218
    %v670 = vunpack.c.l.b16 %v219
    %v671 = vpack.c.b16 %v480, %v479
    %v672 = vpack.c.b16 %v482, %v481
    %v673 = vpack.c.b16 %v484, %v483
    %v674 = vpack.c.b16 %v486, %v485
    %v675 = vpack.c.b16 %v488, %v487
    %v676 = vpack.c.b16 %v490, %v489
    %v677 = vpack.c.b16 %v492, %v491
    %v678 = vpack.c.b16 %v494, %v493
    %v679 = vpack.c.b16 %v496, %v495
    %v680 = vpack.c.b16 %v498, %v497
    %v681 = vpack.c.b16 %v500, %v499
    %v682 = vpack.c.b16 %v502, %v501
    %v683 = vpack.c.b16 %v504, %v503
    %v684 = vpack.c.b16 %v506, %v505
    %v685 = vpack.c.b16 %v508, %v507
    %v686 = vpack.c.b16 %v510, %v509
    %v687 = vpack.c.b16 %v512, %v511
    %v688 = vpack.c.b16 %v514, %v513
    %v689 = vpack.c.b16 %v516, %v515
    %v690 = vpack.c.b16 %v518, %v517
    %v691 = vpack.c.b16 %v520, %v519
    %v692 = vpack.c.b16 %v522, %v521
    %v693 = vpack.c.b16 %v524, %v523
    %v694 = vpack.c.b16 %v526, %v525
    %v695 = vpack.c.b16 %v528, %v527
    %v696 = vpack.c.b16 %v530, %v529
    %v697 = vpack.c.b16 %v532, %v531
    %v698 = vpack.c.b16 %v534, %v533
    %v699 = vpack.c.b16 %v536, %v535
    %v700 = vpack.c.b16 %v538, %v537
    %v701 = vpack.c.b16 %v540, %v539
    %v702 = vpack.c.b16 %v542, %v541
    %v703 = vpack.c.b16 %v544, %v543
    %v704 = vpack.c.b16 %v546, %v545
    %v705 = vpack.c.b16 %v548, %v547
    %v706 = vpack.c.b16 %v550, %v549
    %v707 = vpack.c.b16 %v552, %v551
    %v708 = vpack.c.b16 %v554, %v553
    %v709 = vpack.c.b16 %v556, %v555
    %v710 = vpack.c.b16 %v558, %v557
    %v711 = vpack.c.b16 %v560, %v559
    %v712 = vpack.c.b16 %v562, %v561
    %v713 = vpack.c.b16 %v564, %v563
    %v714 = vpack.c.b16 %v566, %v565
    %v715 = vpack.c.b16 %v568, %v567
    %v716 = vpack.c.b16 %v570, %v569
    %v717 = vpack.c.b16 %v572, %v571
    %v718 = vpack.c.b16 %v574, %v573
    %v719 = vpack.c.b16 %v576, %v575
    %v720 = vpack.c.b16 %v578, %v577
    %v721 = vpack.c.b16 %v580, %v579
    %v722 = vpack.c.b16 %v582, %v581
    %v723 = vpack.c.b16 %v584, %v583
    %v724 = vpack.c.b16 %v586, %v585
    %v725 = vpack.c.b16 %v588, %v587
    %v726 = vpack.c.b16 %v590, %v589
    %v727 = vpack.c.b16 %v592, %v591
    %v728 = vpack.c.b16 %v594, %v593
    %v729 = vpack.c.b16 %v596, %v595
    %v730 = vpack.c.b16 %v598, %v597
    %v731 = vpack.c.b16 %v600, %v599
    %v732 = vpack.c.b16 %v602, %v601
    %v733 = vpack.c.b16 %v604, %v603
    %v734 = vpack.c.b16 %v606, %v605
    %v735 = vpack.c.b16 %v608, %v607
    %v736 = vpack.c.b16 %v610, %v609
    %v737 = vpack.c.b16 %v612, %v611
    %v738 = vpack.c.b16 %v614, %v613
    %v739 = vpack.c.b16 %v616, %v615
    %v740 = vpack.c.b16 %v618, %v617
    %v741 = vpack.c.b16 %v620, %v619
    %v742 = vpack.c.b16 %v622, %v621
    %v743 = vpack.c.b16 %v624, %v623
    %v744 = vpack.c.b16 %v626, %v625
    %v745 = vpack.c.b16 %v628, %v627
    %v746 = vpack.c.b16 %v630, %v629
    %v747 = vpack.c.b16 %v632, %v631
    %v748 = vpack.c.b16 %v634, %v633
    %v749 = vpack.c.b16 %v636, %v635
    %v750 = vpack.c.b16 %v638, %v637
    %v751 = vpack.c.b16 %v640, %v639
    %v752 = vpack.c.b16 %v642, %v641
    %v753 = vpack.c.b16 %v644, %v643
    %v754 = vpack.c.b16 %v646, %v645
    %v755 = vpack.c.b16 %v648, %v647
    %v756 = vpack.c.b16 %v650, %v649
    %v757 = vpack.c.b16 %v652, %v651
    %v758 = vpack.c.b16 %v654, %v653
    %v759 = vpack.c.b16 %v656, %v655
    %v760 = vpack.c.b16 %v658, %v657
    %v761 = vpack.c.b16 %v660, %v659
    %v762 = vpack.c.b16 %v662, %v661
    %v763 = vpack.c.b16 %v664, %v663
    %v764 = vpack.c.b16 %v666, %v665
    %v765 = vpack.c.b16 %v668, %v667
    %v766 = vpack.c.b16 %v670, %v669
    %863 = vmatprep.subr.bf16.mxu0 0
    %864 = vmatpush1.bf16.msra.mxu0 %v678
    %865 = vmatprep.subr.bf16.mxu0 0
    %866 = vmatpush1.bf16.msra.mxu0 %v677
    %867 = vmatprep.subr.bf16.mxu0 0
    %868 = vmatpush1.bf16.msra.mxu0 %v676
    %869 = vmatprep.subr.bf16.mxu0 0
    %870 = vmatpush1.bf16.msra.mxu0 %v675
    %871 = vmatprep.subr.bf16.mxu0 0
    %872 = vmatpush1.bf16.msra.mxu0 %v674
    %873 = vmatprep.subr.bf16.mxu0 0
    %874 = vmatpush1.bf16.msra.mxu0 %v673
    %875 = vmatprep.subr.bf16.mxu0 0
    %876 = vmatpush1.bf16.msra.mxu0 %v672
    %877 = vmatprep.subr.bf16.mxu0 0
    %878 = vmatpush1.bf16.msra.mxu0 %v671
    %879 = vmatprep.subr.bf16.mxu0 0
    %880 = vmatpush2.bf16.msra.mxu0 %v686
    %881 = vmatprep.subr.bf16.mxu0 0
    %882 = vmatpush2.bf16.msra.mxu0 %v685
    %883 = vmatprep.subr.bf16.mxu0 0
    %884 = vmatpush2.bf16.msra.mxu0 %v684
    %885 = vmatprep.subr.bf16.mxu0 0
    %886 = vmatpush2.bf16.msra.mxu0 %v683
    %887 = vmatprep.subr.bf16.mxu0 0
    %888 = vmatpush2.bf16.msra.mxu0 %v682
    %889 = vmatprep.subr.bf16.mxu0 0
    %890 = vmatpush2.bf16.msra.mxu0 %v681
    %891 = vmatprep.subr.bf16.mxu0 0
    %892 = vmatpush2.bf16.msra.mxu0 %v680
    %893 = vmatprep.subr.bf16.mxu0 0
    %894 = vmatpush2.bf16.msra.mxu0 %v679
    %895 = vmatprep.mubr.bf16.mxu0 %v264
    %896 = vmatmul.mubr.bf16.gmra.mxu0 %v263
    %v897 = vpop.f32.mrf.mxu0
    %v898 = vadd.f32 %v225, %v897
    %v899 = vpop.f32.mrf.mxu0
    %v900 = vpop.f32.mrf.mxu0
    %v901 = vadd.f32 %v225, %v900
    %v902 = vpop.f32.mrf.mxu0
    %903 = vdwg.mxu0
    %904 = vmatprep.subr.bf16.mxu0 0
    %905 = vmatpush1.bf16.msra.mxu0 %v694
    %906 = vmatprep.subr.bf16.mxu0 0
    %907 = vmatpush1.bf16.msra.mxu0 %v693
    %908 = vmatprep.subr.bf16.mxu0 0
    %909 = vmatpush1.bf16.msra.mxu0 %v692
    %910 = vmatprep.subr.bf16.mxu0 0
    %911 = vmatpush1.bf16.msra.mxu0 %v691
    %912 = vmatprep.subr.bf16.mxu0 0
    %913 = vmatpush1.bf16.msra.mxu0 %v690
    %914 = vmatprep.subr.bf16.mxu0 0
    %915 = vmatpush1.bf16.msra.mxu0 %v689
    %916 = vmatprep.subr.bf16.mxu0 0
    %917 = vmatpush1.bf16.msra.mxu0 %v688
    %918 = vmatprep.subr.bf16.mxu0 0
    %919 = vmatpush1.bf16.msra.mxu0 %v687
    %920 = vmatprep.subr.bf16.mxu0 0
    %921 = vmatpush2.bf16.msra.mxu0 %v702
    %922 = vmatprep.subr.bf16.mxu0 0
    %923 = vmatpush2.bf16.msra.mxu0 %v701
    %924 = vmatprep.subr.bf16.mxu0 0
    %925 = vmatpush2.bf16.msra.mxu0 %v700
    %926 = vmatprep.subr.bf16.mxu0 0
    %927 = vmatpush2.bf16.msra.mxu0 %v699
    %928 = vmatprep.subr.bf16.mxu0 0
    %929 = vmatpush2.bf16.msra.mxu0 %v698
    %930 = vmatprep.subr.bf16.mxu0 0
    %931 = vmatpush2.bf16.msra.mxu0 %v697
    %932 = vmatprep.subr.bf16.mxu0 0
    %933 = vmatpush2.bf16.msra.mxu0 %v696
    %934 = vmatprep.subr.bf16.mxu0 0
    %935 = vmatpush2.bf16.msra.mxu0 %v695
    %936 = vmatprep.mubr.bf16.mxu0 %v266
    %937 = vmatmul.mubr.bf16.gmra.mxu0 %v265
    %v938 = vpop.f32.mrf.mxu0
    %v939 = vadd.f32 %v898, %v938
    %v940 = vpop.f32.mrf.mxu0
    %v941 = vpop.f32.mrf.mxu0
    %v942 = vadd.f32 %v901, %v941
    %v943 = vpop.f32.mrf.mxu0
    %944 = vdwg.mxu0
    %945 = vmatprep.subr.bf16.mxu0 0
    %946 = vmatpush1.bf16.msra.mxu0 %v710
    %947 = vmatprep.subr.bf16.mxu0 0
    %948 = vmatpush1.bf16.msra.mxu0 %v709
    %949 = vmatprep.subr.bf16.mxu0 0
    %950 = vmatpush1.bf16.msra.mxu0 %v708
    %951 = vmatprep.subr.bf16.mxu0 0
    %952 = vmatpush1.bf16.msra.mxu0 %v707
    %953 = vmatprep.subr.bf16.mxu0 0
    %954 = vmatpush1.bf16.msra.mxu0 %v706
    %955 = vmatprep.subr.bf16.mxu0 0
    %956 = vmatpush1.bf16.msra.mxu0 %v705
    %957 = vmatprep.subr.bf16.mxu0 0
    %958 = vmatpush1.bf16.msra.mxu0 %v704
    %959 = vmatprep.subr.bf16.mxu0 0
    %960 = vmatpush1.bf16.msra.mxu0 %v703
    %961 = vmatprep.subr.bf16.mxu0 0
    %962 = vmatpush2.bf16.msra.mxu0 %v718
    %963 = vmatprep.subr.bf16.mxu0 0
    %964 = vmatpush2.bf16.msra.mxu0 %v717
    %965 = vmatprep.subr.bf16.mxu0 0
    %966 = vmatpush2.bf16.msra.mxu0 %v716
    %967 = vmatprep.subr.bf16.mxu0 0
    %968 = vmatpush2.bf16.msra.mxu0 %v715
    %969 = vmatprep.subr.bf16.mxu0 0
    %970 = vmatpush2.bf16.msra.mxu0 %v714
    %971 = vmatprep.subr.bf16.mxu0 0
    %972 = vmatpush2.bf16.msra.mxu0 %v713
    %973 = vmatprep.subr.bf16.mxu0 0
    %974 = vmatpush2.bf16.msra.mxu0 %v712
    %975 = vmatprep.subr.bf16.mxu0 0
    %976 = vmatpush2.bf16.msra.mxu0 %v711
    %977 = vmatprep.mubr.bf16.mxu0 %v268
    %978 = vmatmul.mubr.bf16.gmra.mxu0 %v267
    %v979 = vpop.f32.mrf.mxu0
    %v980 = vadd.f32 %v939, %v979
    %v981 = vpop.f32.mrf.mxu0
    %v982 = vpop.f32.mrf.mxu0
    %v983 = vadd.f32 %v942, %v982
    %v984 = vpop.f32.mrf.mxu0
    %985 = vdwg.mxu0
    %986 = vmatprep.subr.bf16.mxu0 0
    %987 = vmatpush1.bf16.msra.mxu0 %v726
    %988 = vmatprep.subr.bf16.mxu0 0
    %989 = vmatpush1.bf16.msra.mxu0 %v725
    %990 = vmatprep.subr.bf16.mxu0 0
    %991 = vmatpush1.bf16.msra.mxu0 %v724
    %992 = vmatprep.subr.bf16.mxu0 0
    %993 = vmatpush1.bf16.msra.mxu0 %v723
    %994 = vmatprep.subr.bf16.mxu0 0
    %995 = vmatpush1.bf16.msra.mxu0 %v722
    %996 = vmatprep.subr.bf16.mxu0 0
    %997 = vmatpush1.bf16.msra.mxu0 %v721
    %998 = vmatprep.subr.bf16.mxu0 0
    %999 = vmatpush1.bf16.msra.mxu0 %v720
    %1000 = vmatprep.subr.bf16.mxu0 0
    %1001 = vmatpush1.bf16.msra.mxu0 %v719
    %1002 = vmatprep.subr.bf16.mxu0 0
    %1003 = vmatpush2.bf16.msra.mxu0 %v734
    %1004 = vmatprep.subr.bf16.mxu0 0
    %1005 = vmatpush2.bf16.msra.mxu0 %v733
    %1006 = vmatprep.subr.bf16.mxu0 0
    %1007 = vmatpush2.bf16.msra.mxu0 %v732
    %1008 = vmatprep.subr.bf16.mxu0 0
    %1009 = vmatpush2.bf16.msra.mxu0 %v731
    %1010 = vmatprep.subr.bf16.mxu0 0
    %1011 = vmatpush2.bf16.msra.mxu0 %v730
    %1012 = vmatprep.subr.bf16.mxu0 0
    %1013 = vmatpush2.bf16.msra.mxu0 %v729
    %1014 = vmatprep.subr.bf16.mxu0 0
    %1015 = vmatpush2.bf16.msra.mxu0 %v728
    %1016 = vmatprep.subr.bf16.mxu0 0
    %1017 = vmatpush2.bf16.msra.mxu0 %v727
    %1018 = vmatprep.mubr.bf16.mxu0 %v270
    %1019 = vmatmul.mubr.bf16.gmra.mxu0 %v269
    %v1020 = vpop.f32.mrf.mxu0
    %v1021 = vadd.f32 %v980, %v1020
    %v1022 = vpop.f32.mrf.mxu0
    %v1023 = vpop.f32.mrf.mxu0
    %v1024 = vadd.f32 %v983, %v1023
    %v1025 = vpop.f32.mrf.mxu0
    %1026 = vdwg.mxu0
    %1027 = vmatprep.subr.bf16.mxu0 0
    %1028 = vmatpush1.bf16.msra.mxu0 %v742
    %1029 = vmatprep.subr.bf16.mxu0 0
    %1030 = vmatpush1.bf16.msra.mxu0 %v741
    %1031 = vmatprep.subr.bf16.mxu0 0
    %1032 = vmatpush1.bf16.msra.mxu0 %v740
    %1033 = vmatprep.subr.bf16.mxu0 0
    %1034 = vmatpush1.bf16.msra.mxu0 %v739
    %1035 = vmatprep.subr.bf16.mxu0 0
    %1036 = vmatpush1.bf16.msra.mxu0 %v738
    %1037 = vmatprep.subr.bf16.mxu0 0
    %1038 = vmatpush1.bf16.msra.mxu0 %v737
    %1039 = vmatprep.subr.bf16.mxu0 0
    %1040 = vmatpush1.bf16.msra.mxu0 %v736
    %1041 = vmatprep.subr.bf16.mxu0 0
    %1042 = vmatpush1.bf16.msra.mxu0 %v735
    %1043 = vmatprep.subr.bf16.mxu0 0
    %1044 = vmatpush2.bf16.msra.mxu0 %v750
    %1045 = vmatprep.subr.bf16.mxu0 0
    %1046 = vmatpush2.bf16.msra.mxu0 %v749
    %1047 = vmatprep.subr.bf16.mxu0 0
    %1048 = vmatpush2.bf16.msra.mxu0 %v748
    %1049 = vmatprep.subr.bf16.mxu0 0
    %1050 = vmatpush2.bf16.msra.mxu0 %v747
    %1051 = vmatprep.subr.bf16.mxu0 0
    %1052 = vmatpush2.bf16.msra.mxu0 %v746
    %1053 = vmatprep.subr.bf16.mxu0 0
    %1054 = vmatpush2.bf16.msra.mxu0 %v745
    %1055 = vmatprep.subr.bf16.mxu0 0
    %1056 = vmatpush2.bf16.msra.mxu0 %v744
    %1057 = vmatprep.subr.bf16.mxu0 0
    %1058 = vmatpush2.bf16.msra.mxu0 %v743
    %1059 = vmatprep.mubr.bf16.mxu0 %v272
    %1060 = vmatmul.mubr.bf16.gmra.mxu0 %v271
    %v1061 = vpop.f32.mrf.mxu0
    %v1062 = vadd.f32 %v1021, %v1061
    %v1063 = vpop.f32.mrf.mxu0
    %v1064 = vpop.f32.mrf.mxu0
    %v1065 = vadd.f32 %v1024, %v1064
    %v1066 = vpop.f32.mrf.mxu0
    %1067 = vdwg.mxu0
    %1068 = vmatprep.subr.bf16.mxu0 0
    %1069 = vmatpush1.bf16.msra.mxu0 %v758
    %1070 = vmatprep.subr.bf16.mxu0 0
    %1071 = vmatpush1.bf16.msra.mxu0 %v757
    %1072 = vmatprep.subr.bf16.mxu0 0
    %1073 = vmatpush1.bf16.msra.mxu0 %v756
    %1074 = vmatprep.subr.bf16.mxu0 0
    %1075 = vmatpush1.bf16.msra.mxu0 %v755
    %1076 = vmatprep.subr.bf16.mxu0 0
    %1077 = vmatpush1.bf16.msra.mxu0 %v754
    %1078 = vmatprep.subr.bf16.mxu0 0
    %1079 = vmatpush1.bf16.msra.mxu0 %v753
    %1080 = vmatprep.subr.bf16.mxu0 0
    %1081 = vmatpush1.bf16.msra.mxu0 %v752
    %1082 = vmatprep.subr.bf16.mxu0 0
    %1083 = vmatpush1.bf16.msra.mxu0 %v751
    %1084 = vmatprep.subr.bf16.mxu0 0
    %1085 = vmatpush2.bf16.msra.mxu0 %v766
    %1086 = vmatprep.subr.bf16.mxu0 0
    %1087 = vmatpush2.bf16.msra.mxu0 %v765
    %1088 = vmatprep.subr.bf16.mxu0 0
    %1089 = vmatpush2.bf16.msra.mxu0 %v764
    %1090 = vmatprep.subr.bf16.mxu0 0
    %1091 = vmatpush2.bf16.msra.mxu0 %v763
    %1092 = vmatprep.subr.bf16.mxu0 0
    %1093 = vmatpush2.bf16.msra.mxu0 %v762
    %1094 = vmatprep.subr.bf16.mxu0 0
    %1095 = vmatpush2.bf16.msra.mxu0 %v761
    %1096 = vmatprep.subr.bf16.mxu0 0
    %1097 = vmatpush2.bf16.msra.mxu0 %v760
    %1098 = vmatprep.subr.bf16.mxu0 0
    %1099 = vmatpush2.bf16.msra.mxu0 %v759
    %1100 = vmatprep.mubr.bf16.mxu0 %v274
    %1101 = vmatmul.mubr.bf16.gmra.mxu0 %v273
    %v1102 = vpop.f32.mrf.mxu0
    %v1103 = vadd.f32 %v1062, %v1102
    %v1104 = vpop.f32.mrf.mxu0
    %v1105 = vpop.f32.mrf.mxu0
    %v1106 = vadd.f32 %v1065, %v1105
    %v1107 = vpop.f32.mrf.mxu0
    %1108 = vdwg.mxu0
    %v1109 = vmax.f32 %v1103, 0.0
    %v1110 = vmax.f32 %v1106, 0.0
    %vm1111 = vcmask 261120
    %1112 = vst.msk [vmem:[#allocation2] sm:$0xff] %vm1111, %v1109
    %1113 = vst.msk [vmem:[#allocation2 + $0x8] sm:$0xff] %vm1111, %v1110
    // Predicated region
    $region14: #{tpu_custom_call.1} parent=1 // pred_check
      _
    $region15: #{tpu_custom_call.1} parent=1 // pred_check_branch
      %1115 = sbr.rel (0) target = $region17
    $region16: #{tpu_custom_call.1} parent=1 // pred_region
      %s1117 = ssub.s32 256, 256
      %1118 = vsyncadd [#allocation3], %s1117
      %s1119 = sshll.u32 [#allocation2], 4
      %s1120 = int_to_ptr.vmem [resolvable:$true] %s1119
      %1125 = dma.vmem_to_hbm [thread:$0]  %s1120, 256, %s3, [#allocation3], 128, 128, 8
    $region17: #{tpu_custom_call.1} parent=1 // pred_fallthru
      _
    // Predicated region
    $region18: #{tpu_custom_call.1} parent=1 // pred_check
      _
    $region19: #{tpu_custom_call.1} parent=1 // pred_check_branch
      %1127 = sbr.rel (0) target = $region21
    $region20: #{tpu_custom_call.1} parent=1 // pred_region
      %1128 = dma.done [#allocation3], 256
    $region21: #{tpu_custom_call.1} parent=1 // pred_fallthru
      _
    %1129 = vsyncpa [#allocation3], 1

</llo_original>
